<compile_context>
chip_gen: v6e
topology: v6e:2x2x1
jax: 0.10.0
libtpu: 0.0.40
codegen_flags: <defaults>
</compile_context>

<pallas_src>
import jax
import jax.numpy as jnp
from jax.experimental import pallas as pl
from jax.experimental.pallas import tpu as pltpu


def _rehu(v):
    # ReHU with d = 0.1 -> a = 10 (a/2 = 5), b = -0.05.
    # 5 * v * |v| == sign(v) * 5 * v^2, one fewer VPU op.
    quad = 5.0 * v * jnp.abs(v)
    return jnp.maximum(jnp.clip(quad, 0.0, 0.05), v - 0.05)


def build_fused_weight(w1_z, w2_z, dtype=None):
    """Block-anti-diagonal fused weight: [x z] @ W = [z @ w2_z.T, x @ w1_z.T].

    Precompute this once outside the hot path (or let jit constant-fold it).
    """
    zdim, dim = w1_z.shape
    assert w2_z.shape == (dim, zdim)
    dtype = dtype or w1_z.dtype
    top = jnp.concatenate(
        [jnp.zeros((dim, dim), dtype), w1_z.T.astype(dtype)], axis=1)
    bot = jnp.concatenate(
        [w2_z.T.astype(dtype), jnp.zeros((zdim, zdim), dtype)], axis=1)
    return jnp.concatenate([top, bot], axis=0)          # (D, D)


def hamilton_kernel(in_ref, w_ref, out_ref):
    v = in_ref[...]                                     # (TB, D)
    # Single MXU pass; accumulate in f32 regardless of operand dtype.
    lin = jnp.dot(v.astype(w_ref.dtype), w_ref[...],
                  preferred_element_type=jnp.float32)   # (TB, D)
    pre = lin - 0.1 * v.astype(jnp.float32)
    out_ref[...] = _rehu(pre).astype(out_ref.dtype)     # lane-dense (TB, D) store


def hamilton_v3_forward(t, input_, w1_z, w2_z, *, dim, kdim,
                        block_b=512, matmul_dtype=None):
    """Pallas implementation of Hamilton_V3.forward (t is unused, as in torch).

    matmul_dtype: set to jnp.bfloat16 on v6e/v7x for MXU-native throughput
    (f32 accumulation is kept; ReHU epilogue stays in f32).
    """
    del t
    B, D = input_.shape
    zdim = dim * kdim
    assert D == dim + zdim
    assert w1_z.shape == (zdim, dim)
    assert w2_z.shape == (dim, zdim)

    w_dtype = matmul_dtype or input_.dtype
    w_fused = build_fused_weight(w1_z, w2_z, dtype=w_dtype)   # (D, D)

    # Batch tile: multiple of 8 (or the whole batch when it is small); keeps
    # 2x(in tile + out tile) double buffers + the resident weight well under
    # the scoped-VMEM default on every generation (incl. v7x's 64 MiB).
    tb = B if B <= block_b else block_b
    grid = (pl.cdiv(B, tb),)

    out = pl.pallas_call(
        hamilton_kernel,
        out_shape=jax.ShapeDtypeStruct((B, D), input_.dtype),
        grid=grid,
        in_specs=[
            pl.BlockSpec((tb, D), lambda i: (i, 0)),    # activations: streamed
            pl.BlockSpec((D, D), lambda i: (0, 0)),     # fused weight: resident
        ],
        out_specs=pl.BlockSpec((tb, D), lambda i: (i, 0)),
        compiler_params=pltpu.CompilerParams(
            dimension_semantics=("parallel",)),         # megacore / 2-TC split
    )(input_, w_fused)
    return out


def _xavier_uniform(key, shape, gain=1.414):
    fan_out, fan_in = shape  # matches nn.Linear-style weight (out, in)
    bound = gain * jnp.sqrt(6.0 / (fan_in + fan_out))
    return jax.random.uniform(key, shape, jnp.float32, minval=-bound, maxval=bound)


if __name__ == "__main__":
    # Small shapes consistent with the module: dim=32, kdim=4, batch=8.
    # TODO(synk): at B=8 the MXU is >94% idle; real speedups require the
    # caller to batch/vmap timesteps so the effective batch is >= 128-256.
    dim, kdim, B = 32, 4, 8
    zdim = dim * kdim

    key = jax.random.PRNGKey(0)
    k_in, k_w1, k_w2 = jax.random.split(key, 3)

    input_ = jax.random.normal(k_in, (B, dim + zdim), jnp.float32)
    w1_z = _xavier_uniform(k_w1, (zdim, dim))
    w2_z = _xavier_uniform(k_w2, (dim, zdim))

    out = hamilton_v3_forward(0.0, input_, w1_z, w2_z, dim=dim, kdim=kdim)
    out = jax.block_until_ready(out)

    # Pure-JAX reference of the original (two-matmul) formulation.
    x_ref = input_[:, :dim]
    z_ref = input_[:, dim:]
    ref_z = _rehu(x_ref @ w1_z.T - 0.1 * z_ref)
    ref_x = _rehu(z_ref @ w2_z.T - 0.1 * x_ref)
    ref = jnp.concatenate([ref_x, ref_z], axis=1)       # hstack([x_out, z_out])

    assert out.shape == (B, dim + zdim)
    assert jnp.allclose(out, ref, atol=1e-5, rtol=1e-5)

    print("KERNEL_OK")
</pallas_src>

<mosaic_0001>
module attributes {stable_mosaic.version = 11 : i64} {
  func.func @hamilton_kernel(%arg0: i32, %arg1: memref<8x160xf32, #tpu.memory_space<vmem>>, %arg2: memref<160x160xf32, #tpu.memory_space<vmem>>, %arg3: memref<8x160xf32, #tpu.memory_space<vmem>>) attributes {dimension_semantics = [#tpu.dimension_semantics<parallel>], iteration_bounds = array<i64: 1>, scalar_prefetch = 0 : i64, scratch_operands = 0 : i64, tpu.core_type = #tpu.core_type<tc>, window_params = [{transform_indices = @transform_0, window_bounds = array<i64: 8, 160>}, {pipeline_mode = #tpu.pipeline_mode<synchronous>, transform_indices = @transform_1, window_bounds = array<i64: 160, 160>}, {transform_indices = @transform_2, window_bounds = array<i64: 8, 160>}]} {
    %c0 = arith.constant 0 : index
    %c0_0 = arith.constant 0 : index
    %0 = vector.load %arg1[%c0, %c0_0] : memref<8x160xf32, #tpu.memory_space<vmem>>, vector<8x160xf32>
    %c0_1 = arith.constant 0 : index
    %c0_2 = arith.constant 0 : index
    %1 = vector.load %arg2[%c0_1, %c0_2] : memref<160x160xf32, #tpu.memory_space<vmem>>, vector<160x160xf32>
    %cst = arith.constant dense<0.000000e+00> : vector<8x160xf32>
    %2 = tpu.matmul %0, %1, %cst {dimension_numbers = #tpu.dot_dimension_numbers<[1], [0], [0], [1], [0, 0, 1, 1], [], []>} : vector<8x160xf32>, vector<160x160xf32>, vector<8x160xf32> -> vector<8x160xf32>
    %cst_3 = arith.constant 1.000000e-01 : f32
    %3 = vector.broadcast %cst_3 : f32 to vector<8x160xf32>
    %4 = arith.mulf %3, %0 : vector<8x160xf32>
    %5 = arith.subf %2, %4 : vector<8x160xf32>
    %cst_4 = arith.constant 5.000000e+00 : f32
    %6 = vector.broadcast %cst_4 : f32 to vector<8x160xf32>
    %7 = arith.mulf %6, %5 : vector<8x160xf32>
    %8 = math.absf %5 : vector<8x160xf32>
    %9 = arith.mulf %7, %8 : vector<8x160xf32>
    %cst_5 = arith.constant 0.000000e+00 : f32
    %cst_6 = arith.constant 5.000000e-02 : f32
    %10 = vector.broadcast %cst_5 : f32 to vector<8x160xf32>
    %11 = arith.maximumf %10, %9 : vector<8x160xf32>
    %12 = vector.broadcast %cst_6 : f32 to vector<8x160xf32>
    %13 = arith.minimumf %12, %11 : vector<8x160xf32>
    %cst_7 = arith.constant 5.000000e-02 : f32
    %14 = vector.broadcast %cst_7 : f32 to vector<8x160xf32>
    %15 = arith.subf %5, %14 : vector<8x160xf32>
    %16 = arith.maximumf %13, %15 : vector<8x160xf32>
    %c0_8 = arith.constant 0 : index
    %c0_9 = arith.constant 0 : index
    %17 = vector.load %arg3[%c0_8, %c0_9] : memref<8x160xf32, #tpu.memory_space<vmem>>, vector<8x160xf32>
    tpu.vector_store %arg3[%c0_8, %c0_9], %16 {strides = array<i32>} : memref<8x160xf32, #tpu.memory_space<vmem>>, vector<8x160xf32>,
    return
  }
  func.func @transform_0(%arg0: i32) -> (i32, i32) {
    %c0_i32 = arith.constant 0 : i32
    %c0_i32_0 = arith.constant 0 : i32
    return %arg0, %c0_i32 : i32, i32
  }
  func.func @transform_1(%arg0: i32) -> (i32, i32) {
    %c0_i32 = arith.constant 0 : i32
    %c0_i32_0 = arith.constant 0 : i32
    %c0_i32_1 = arith.constant 0 : i32
    return %c0_i32, %c0_i32_0 : i32, i32
  }
  func.func @transform_2(%arg0: i32) -> (i32, i32) {
    %c0_i32 = arith.constant 0 : i32
    %c0_i32_0 = arith.constant 0 : i32
    return %arg0, %c0_i32 : i32, i32
  }
}

</mosaic_0001>

<llo_original>
// kernel: tpu_custom_call.1
$region0: #{tpu_custom_call.1}
  #allocation0 [shape = 'u32[]', space=smem, size = 0x4, offset = 0x4, fixed_abs, tag = 'smem constant byte address 0x4 - core index']
  #allocation1 [shape = 'u32[144,128]{1,0:T(1,128)}', space=vmem, size = 0x12000, scoped, tag = 'internal scratch']
  %s0 = inlined_call_operand.hbm [shape: f32[8,160], index: 0, kind: input, shape index: {}]
  %s1 = inlined_call_operand.hbm [shape: f32[160,160], index: 1, kind: input, shape index: {}]
  %s2 = inlined_call_operand.hbm [shape: f32[8,160], index: 2, kind: output, shape index: {}]
  %s3 = sld [smem:[#allocation0]]
  $region26: #{tpu_custom_call.1} parent=0
    _
  %s5 = ssub.s32 1, %s3
  %s6 = scalar_select 0, %s5, %s3
  $region1: #{tpu_custom_call.1} parent=0
    #allocation2 [shape = 'u8[8192]{0}', space=vmem, size = 0x2000, scoped, tag = 'input window, operand 0, single buffered']
    #allocation3 [shape = 's32[1]{0}', space=sflag, size = 0x4, scoped, tag = 'scoped memory for tpu_custom_call.1']
    #allocation4 [shape = 's32[1]{0}', space=sflag, size = 0x4, scoped, tag = 'scoped memory for tpu_custom_call.1']
    #allocation5 [shape = 'u8[163840]{0}', space=vmem, size = 0x28000, scoped, tag = 'input window, operand 1, single buffered']
    #allocation6 [shape = 's32[1]{0}', space=sflag, size = 0x4, scoped, tag = 'scoped memory for tpu_custom_call.1']
    #allocation7 [shape = 'u8[8192]{0}', space=vmem, size = 0x2000, scoped, tag = 'output window, operand 0, single buffered']
    %7 = vsyncpa [#allocation3], 0
    %8 = vsyncpa [#allocation6], 0
    %9 = vsyncpa [#allocation4], 0
    // Predicated region
    $region2: #{tpu_custom_call.1} parent=1 // pred_check
      _
    $region3: #{tpu_custom_call.1} parent=1 // pred_check_branch
      %11 = sbr.rel (0) target = $region5
    $region4: #{tpu_custom_call.1} parent=1 // pred_region
      %s13 = ssub.s32 256, 256
      %14 = vsyncadd [#allocation3], %s13
      %s16 = sshll.u32 [#allocation2], 4
      %s17 = int_to_ptr.vmem [resolvable:$true] %s16
      %19 = dma.hbm_to_vmem [thread:$0]  %s0, 256, %s17, [#allocation3]
    $region5: #{tpu_custom_call.1} parent=1 // pred_fallthru
      _
    // Predicated region
    $region6: #{tpu_custom_call.1} parent=1 // pred_check
      _
    $region7: #{tpu_custom_call.1} parent=1 // pred_check_branch
      %21 = sbr.rel (0) target = $region9
    $region8: #{tpu_custom_call.1} parent=1 // pred_region
      %s23 = ssub.s32 5120, 5120
      %24 = vsyncadd [#allocation6], %s23
      %s25 = sshll.u32 [#allocation5], 4
      %s26 = int_to_ptr.vmem [resolvable:$true] %s25
      %31 = dma.hbm_to_vmem [thread:$0]  %s1, 5120, %s26, [#allocation6], 256, 256, 16
    $region9: #{tpu_custom_call.1} parent=1 // pred_fallthru
      _
    // Predicated region
    $region10: #{tpu_custom_call.1} parent=1 // pred_check
      _
    $region11: #{tpu_custom_call.1} parent=1 // pred_check_branch
      %33 = sbr.rel (0) target = $region13
    $region12: #{tpu_custom_call.1} parent=1 // pred_region
      %34 = dma.done [#allocation3], 256
    $region13: #{tpu_custom_call.1} parent=1 // pred_fallthru
      _
    // Predicated region
    $region14: #{tpu_custom_call.1} parent=1 // pred_check
      _
    $region15: #{tpu_custom_call.1} parent=1 // pred_check_branch
      %36 = sbr.rel (0) target = $region17
    $region16: #{tpu_custom_call.1} parent=1 // pred_region
      %37 = dma.done [#allocation6], 5120
    $region17: #{tpu_custom_call.1} parent=1 // pred_fallthru
      _
    %v38 = vld [vmem:[#allocation2] sm:$0xff]
    %v39 = vld [vmem:[#allocation2 + $0x8] sm:$0xff]
    %v40 = vld [vmem:[#allocation5] sm:$0xff]
    %v41 = vld [vmem:[#allocation5 + $0x8] sm:$0xff]
    %v42 = vld [vmem:[#allocation5 + $0x10] sm:$0xff]
    %v43 = vld [vmem:[#allocation5 + $0x18] sm:$0xff]
    %v44 = vld [vmem:[#allocation5 + $0x20] sm:$0xff]
    %v45 = vld [vmem:[#allocation5 + $0x28] sm:$0xff]
    %v46 = vld [vmem:[#allocation5 + $0x30] sm:$0xff]
    %v47 = vld [vmem:[#allocation5 + $0x38] sm:$0xff]
    %v48 = vld [vmem:[#allocation5 + $0x40] sm:$0xff]
    %v49 = vld [vmem:[#allocation5 + $0x48] sm:$0xff]
    %v50 = vld [vmem:[#allocation5 + $0x50] sm:$0xff]
    %v51 = vld [vmem:[#allocation5 + $0x58] sm:$0xff]
    %v52 = vld [vmem:[#allocation5 + $0x60] sm:$0xff]
    %v53 = vld [vmem:[#allocation5 + $0x68] sm:$0xff]
    %v54 = vld [vmem:[#allocation5 + $0x70] sm:$0xff]
    %v55 = vld [vmem:[#allocation5 + $0x78] sm:$0xff]
    %v56 = vld [vmem:[#allocation5 + $0x80] sm:$0xff]
    %v57 = vld [vmem:[#allocation5 + $0x88] sm:$0xff]
    %v58 = vld [vmem:[#allocation5 + $0x90] sm:$0xff]
    %v59 = vld [vmem:[#allocation5 + $0x98] sm:$0xff]
    %v60 = vld [vmem:[#allocation5 + $0xa0] sm:$0xff]
    %v61 = vld [vmem:[#allocation5 + $0xa8] sm:$0xff]
    %v62 = vld [vmem:[#allocation5 + $0xb0] sm:$0xff]
    %v63 = vld [vmem:[#allocation5 + $0xb8] sm:$0xff]
    %v64 = vld [vmem:[#allocation5 + $0xc0] sm:$0xff]
    %v65 = vld [vmem:[#allocation5 + $0xc8] sm:$0xff]
    %v66 = vld [vmem:[#allocation5 + $0xd0] sm:$0xff]
    %v67 = vld [vmem:[#allocation5 + $0xd8] sm:$0xff]
    %v68 = vld [vmem:[#allocation5 + $0xe0] sm:$0xff]
    %v69 = vld [vmem:[#allocation5 + $0xe8] sm:$0xff]
    %v70 = vld [vmem:[#allocation5 + $0xf0] sm:$0xff]
    %v71 = vld [vmem:[#allocation5 + $0xf8] sm:$0xff]
    %v72 = vld [vmem:[#allocation5 + $0x100] sm:$0xff]
    %v73 = vld [vmem:[#allocation5 + $0x108] sm:$0xff]
    %v74 = vld [vmem:[#allocation5 + $0x110] sm:$0xff]
    %v75 = vld [vmem:[#allocation5 + $0x118] sm:$0xff]
    %v76 = vld [vmem:[#allocation5 + $0x120] sm:$0xff]
    %v77 = vld [vmem:[#allocation5 + $0x128] sm:$0xff]
    %v78 = vld [vmem:[#allocation5 + $0x130] sm:$0xff]
    %v79 = vld [vmem:[#allocation5 + $0x138] sm:$0xff]
    %vm80 = vcmask 261120
    %v82 = vsel %vm80, %v39, 0
    %84 = vmatprep.subr.mxu0 %v71
    %85 = vmatpush1.msra.mxu0 %v70
    %86 = vmatprep.subr.mxu0 %v69
    %87 = vmatpush1.msra.mxu0 %v68
    %88 = vmatprep.subr.mxu0 %v67
    %89 = vmatpush1.msra.mxu0 %v66
    %90 = vmatprep.subr.mxu0 %v65
    %91 = vmatpush1.msra.mxu0 %v64
    %92 = vmatprep.subr.mxu0 %v63
    %93 = vmatpush1.msra.mxu0 %v62
    %94 = vmatprep.subr.mxu0 %v61
    %95 = vmatpush1.msra.mxu0 %v60
    %96 = vmatprep.subr.mxu0 %v59
    %97 = vmatpush1.msra.mxu0 %v58
    %98 = vmatprep.subr.mxu0 %v57
    %99 = vmatpush1.msra.mxu0 %v56
    %100 = vmatprep.subr.mxu0 %v55
    %101 = vmatpush1.msra.mxu0 %v54
    %102 = vmatprep.subr.mxu0 %v53
    %103 = vmatpush1.msra.mxu0 %v52
    %104 = vmatprep.subr.mxu0 %v51
    %105 = vmatpush1.msra.mxu0 %v50
    %106 = vmatprep.subr.mxu0 %v49
    %107 = vmatpush1.msra.mxu0 %v48
    %108 = vmatprep.subr.mxu0 %v47
    %109 = vmatpush1.msra.mxu0 %v46
    %110 = vmatprep.subr.mxu0 %v45
    %111 = vmatpush1.msra.mxu0 %v44
    %112 = vmatprep.subr.mxu0 %v43
    %113 = vmatpush1.msra.mxu0 %v42
    %114 = vmatprep.subr.mxu0 %v41
    %115 = vmatpush1.msra.mxu0 %v40
    %116 = vmatprep.subr.mxu0 0.0
    %117 = vmatpush2.msra.mxu0 0.0
    %118 = vmatprep.subr.mxu0 0.0
    %119 = vmatpush2.msra.mxu0 0.0
    %120 = vmatprep.subr.mxu0 0.0
    %121 = vmatpush2.msra.mxu0 0.0
    %122 = vmatprep.subr.mxu0 0.0
    %123 = vmatpush2.msra.mxu0 0.0
    %124 = vmatprep.subr.mxu0 0.0
    %125 = vmatpush2.msra.mxu0 0.0
    %126 = vmatprep.subr.mxu0 0.0
    %127 = vmatpush2.msra.mxu0 0.0
    %128 = vmatprep.subr.mxu0 0.0
    %129 = vmatpush2.msra.mxu0 0.0
    %130 = vmatprep.subr.mxu0 0.0
    %131 = vmatpush2.msra.mxu0 0.0
    %132 = vmatprep.subr.mxu0 0.0
    %133 = vmatpush2.msra.mxu0 0.0
    %134 = vmatprep.subr.mxu0 0.0
    %135 = vmatpush2.msra.mxu0 0.0
    %136 = vmatprep.subr.mxu0 0.0
    %137 = vmatpush2.msra.mxu0 0.0
    %138 = vmatprep.subr.mxu0 0.0
    %139 = vmatpush2.msra.mxu0 0.0
    %140 = vmatprep.subr.mxu0 %v79
    %141 = vmatpush2.msra.mxu0 %v78
    %142 = vmatprep.subr.mxu0 %v77
    %143 = vmatpush2.msra.mxu0 %v76
    %144 = vmatprep.subr.mxu0 %v75
    %145 = vmatpush2.msra.mxu0 %v74
    %146 = vmatprep.subr.mxu0 %v73
    %147 = vmatpush2.msra.mxu0 %v72
    %148 = vmatprep.mubr.f32.mxu0 %v82
    %149 = vmatmul.mubr.f32.gmra.mxu0 %v38
    %v150 = vpop.f32.mrf.mxu0
    %v151 = vadd.f32 0.0, %v150
    %v152 = vpop.f32.mrf.mxu0
    %v153 = vadd.f32 0.0, %v152
    %154 = vdwg.mxu0
    %v155 = vmul.f32 %v38, 0.1
    %v156 = vmul.f32 %v39, 0.1
    %v157 = vsub.f32 %v151, %v155
    %v158 = vsub.f32 %v153, %v156
    %v159 = vmul.f32 %v157, 5.0
    %v160 = vmul.f32 %v158, 5.0
    %v161 = vand.u32 2147483647, %v157
    %v162 = vand.u32 2147483647, %v158
    %v163 = vmul.f32 %v159, %v161
    %v164 = vmul.f32 %v160, %v162
    %v165 = vmax.f32 %v163, 0.0
    %v166 = vmax.f32 %v164, 0.0
    %v167 = vmin.f32 %v165, 0.05
    %v168 = vmin.f32 %v166, 0.05
    %v169 = vsub.f32 %v157, 0.05
    %v170 = vsub.f32 %v158, 0.05
    %v171 = vmax.f32 %v167, %v169
    %v172 = vmax.f32 %v168, %v170
    %173 = vst [vmem:[#allocation7] sm:$0xff] %v171
    %174 = vst.msk [vmem:[#allocation7 + $0x8] sm:$0xff] %vm80, %v172
    // Predicated region
    $region18: #{tpu_custom_call.1} parent=1 // pred_check
      _
    $region19: #{tpu_custom_call.1} parent=1 // pred_check_branch
      %176 = sbr.rel (0) target = $region21
    $region20: #{tpu_custom_call.1} parent=1 // pred_region
      %s178 = ssub.s32 256, 256
      %179 = vsyncadd [#allocation4], %s178
      %s181 = sshll.u32 [#allocation7], 4
      %s182 = int_to_ptr.vmem [resolvable:$true] %s181
      %184 = dma.vmem_to_hbm [thread:$0]  %s182, 256, %s2, [#allocation4]
    $region21: #{tpu_custom_call.1} parent=1 // pred_fallthru
      _
    // Predicated region
    $region22: #{tpu_custom_call.1} parent=1 // pred_check
      _
    $region23: #{tpu_custom_call.1} parent=1 // pred_check_branch
      %186 = sbr.rel (0) target = $region25
    $region24: #{tpu_custom_call.1} parent=1 // pred_region
      %187 = dma.done [#allocation4], 256
    $region25: #{tpu_custom_call.1} parent=1 // pred_fallthru
      _
    %188 = vsyncpa [#allocation3], 1
    %189 = vsyncpa [#allocation6], 1
    %190 = vsyncpa [#allocation4], 1

</llo_original>
